<compile_context>
chip_gen: v6e
topology: v6e:2x2x1
jax: 0.10.0
libtpu: 0.0.40
codegen_flags: <defaults>
</compile_context>

<pallas_src>
import jax
import jax.numpy as jnp
import numpy as np
from jax.experimental import pallas as pl
from jax.experimental.pallas import tpu as pltpu


# ---------------------------------------------------------------------------
# Kernel: one grid step == one decode step.  State (h, context) carried in VMEM
# scratch; weights & the precomputed attention projection stay VMEM-resident.
# ---------------------------------------------------------------------------
def _decoder_step_kernel(x_ref, h0_ref, c0_ref, encw_ref,
                         wgru_ref, bgru_ref, wout_ref, bout_ref,
                         dec_out_ref, ctx_ref, hfin_ref,
                         xh_scr, h_scr, c_scr):
    t = pl.program_id(0)
    H = h_scr.shape[-1]
    I = x_ref.shape[-1]
    f32 = jnp.float32

    # Initialize the carried state from the provided initial hidden / context.
    @pl.when(t == 0)
    def _():
        h_scr[...] = h0_ref[...]
        c_scr[...] = c0_ref[...]

    h = h_scr[...]                                    # (B, H)   lasts
    # Assemble the fused GRU input [dec_input | lastc | h] directly in VMEM scratch
    # (avoids an in-kernel concatenate and keeps a single MXU push below).
    xh_scr[:, :I] = x_ref[...]
    xh_scr[:, I:I + H] = c_scr[...]
    xh_scr[:, I + H:] = h

    # ---- GRU cell: ONE fused matmul, columns = [r | z | n_i | n_h] ----
    g = jnp.dot(xh_scr[...], wgru_ref[...], preferred_element_type=f32) + bgru_ref[...]
    r = jax.nn.sigmoid(g[:, :H])
    z = jax.nn.sigmoid(g[:, H:2 * H])
    n = jnp.tanh(g[:, 2 * H:3 * H] + r * g[:, 3 * H:])
    h_new = (1.0 - z) * n + z * h                     # (B, H) == dec_output == hidden

    # ---- Luong "general" attention against the precomputed projection ----
    enc_w = encw_ref[...]                             # (B, S, H), loop-invariant, resident
    q = h_new[:, None, :]                             # (B, 1, H)
    s = jnp.einsum('bqh,bsh->bqs', q, enc_w, preferred_element_type=f32)   # (B, 1, S)
    s = s - jnp.max(s, axis=-1, keepdims=True)
    e = jnp.exp(s)
    inv = pl.reciprocal(jnp.sum(e, axis=-1, keepdims=True), approx=True)   # EUP slot
    alpha = e * inv                                   # softmax over S
    ctx = jnp.einsum('bqs,bsh->bqh', alpha, enc_w,
                     preferred_element_type=f32)[:, 0, :]                  # (B, H)

    # ---- output projection: self.out(dec_output) ----
    dec_out = jnp.dot(h_new, wout_ref[...], preferred_element_type=f32) + bout_ref[...]

    dec_out_ref[...] = dec_out.astype(dec_out_ref.dtype)
    ctx_ref[...] = ctx.astype(ctx_ref.dtype)
    hfin_ref[...] = h_new.astype(hfin_ref.dtype)      # resident block; last step wins

    # carry state to the next grid step
    h_scr[...] = h_new
    c_scr[...] = ctx


# ---------------------------------------------------------------------------
# One-time parameter preparation (hoisted out of the decode loop).
# ---------------------------------------------------------------------------
def prepare_params(params):
    w_ih, w_hh = params["w_ih"], params["w_hh"]       # (3H, I+H), (3H, H)
    b_ih, b_hh = params["b_ih"], params["b_hh"]       # (3H,), (3H,)
    H = w_hh.shape[1]
    IpH = w_ih.shape[1]                               # I + H
    dt = w_ih.dtype

    # Fused GRU weight (I+2H, 4H): columns [r | z | n_input | n_hidden].
    top = jnp.concatenate([w_ih[:H].T, w_ih[H:2 * H].T, w_ih[2 * H:].T,
                           jnp.zeros((IpH, H), dt)], axis=1)          # x-part rows
    bot = jnp.concatenate([w_hh[:H].T, w_hh[H:2 * H].T,
                           jnp.zeros((H, H), dt), w_hh[2 * H:].T], axis=1)  # h-part rows
    w_gru = jnp.concatenate([top, bot], axis=0)                        # (I+2H, 4H)
    b_gru = jnp.concatenate([b_ih[:H] + b_hh[:H],
                             b_ih[H:2 * H] + b_hh[H:2 * H],
                             b_ih[2 * H:], b_hh[2 * H:]]).reshape(1, 4 * H)

    return {
        "w_gru": w_gru, "b_gru": b_gru,
        "w_attn_t": params["w_attn"].T, "b_attn": params["b_attn"].reshape(1, 1, H),
        "w_out_t": params["w_out"].T, "b_out": params["b_out"].reshape(1, -1),
    }


def precompute_enc_w(prep, enc_output):
    """Loop-invariant Luong projection; compute ONCE per encoded sequence."""
    return enc_output @ prep["w_attn_t"] + prep["b_attn"]   # (B, S, H)


# ---------------------------------------------------------------------------
# pallas_call wrapper shared by the single-step and fused multi-step paths.
# ---------------------------------------------------------------------------
def _decode_pallas(prep, dec_inputs, h0, c0, enc_w):
    T, B, I = dec_inputs.shape
    H = h0.shape[-1]
    S = enc_w.shape[1]
    O = prep["w_out_t"].shape[-1]

    const2 = lambda t: (0, 0)
    const3 = lambda t: (0, 0, 0)
    step3 = lambda t: (t, 0, 0)

    dec_out_seq, ctx_seq, h_fin = pl.pallas_call(
        _decoder_step_kernel,
        grid=(T,),
        in_specs=[
            pl.BlockSpec((None, B, I), step3),            # dec_inputs, one step per grid pt
            pl.BlockSpec((B, H), const2),                 # h0 (resident)
            pl.BlockSpec((B, H), const2),                 # c0 (resident)
            pl.BlockSpec((B, S, H), const3),              # precomputed enc_w (resident)
            pl.BlockSpec((I + 2 * H, 4 * H), const2),     # fused GRU weight (resident)
            pl.BlockSpec((1, 4 * H), const2),             # fused GRU bias
            pl.BlockSpec((H, O), const2),                 # output projection weight
            pl.BlockSpec((1, O), const2),                 # output projection bias
        ],
        out_specs=(
            pl.BlockSpec((None, B, O), step3),            # dec_out per step
            pl.BlockSpec((None, B, H), step3),            # attn_weight (context) per step
            pl.BlockSpec((B, H), const2),                 # final hidden (resident)
        ),
        out_shape=(jax.ShapeDtypeStruct((T, B, O), jnp.float32),
                   jax.ShapeDtypeStruct((T, B, H), jnp.float32),
                   jax.ShapeDtypeStruct((B, H), jnp.float32)),
        scratch_shapes=[pltpu.VMEM((B, I + 2 * H), jnp.float32),   # fused GRU input
                        pltpu.VMEM((B, H), jnp.float32),           # carried hidden
                        pltpu.VMEM((B, H), jnp.float32)],          # carried context
        compiler_params=pltpu.CompilerParams(
            dimension_semantics=("arbitrary",)),          # sequential recurrence over T
    )(dec_inputs, h0, c0, enc_w,
      prep["w_gru"], prep["b_gru"], prep["w_out_t"], prep["b_out"])
    return dec_out_seq, ctx_seq, h_fin


def decoder_forward(prep, dec_input, lasts, lastc, enc_w):
    """Single decode step == Decoder.forward (enc_w from precompute_enc_w)."""
    dec_seq, ctx_seq, h_fin = _decode_pallas(prep, dec_input[None], lasts[0], lastc, enc_w)
    return dec_seq[0], ctx_seq[0], h_fin[None]        # (B,O), (B,H), (1,B,H)


def decoder_decode(prep, dec_inputs, lasts, lastc, enc_w):
    """Fused T-step decode (teacher forcing): carries hidden & context in VMEM across
    grid steps; weights and enc_w are DMA'd once and stay resident."""
    dec_seq, ctx_seq, h_fin = _decode_pallas(prep, dec_inputs, lasts[0], lastc, enc_w)
    return dec_seq, ctx_seq, h_fin[None]              # (T,B,O), (T,B,H), (1,B,H)


# ---------------------------------------------------------------------------
# Pure-JAX reference (mirrors the PyTorch forward exactly) + parameter init.
# ---------------------------------------------------------------------------
def decoder_forward_ref(params, dec_input, lasts, lastc, enc_output):
    x = jnp.concatenate([dec_input, lastc], axis=1)
    h = lasts[0]
    H = h.shape[-1]
    gi = x @ params["w_ih"].T + params["b_ih"]
    gh = h @ params["w_hh"].T + params["b_hh"]
    r = jax.nn.sigmoid(gi[:, :H] + gh[:, :H])
    z = jax.nn.sigmoid(gi[:, H:2 * H] + gh[:, H:2 * H])
    n = jnp.tanh(gi[:, 2 * H:] + r * gh[:, 2 * H:])
    h_new = (1.0 - z) * n + z * h
    enc_w = enc_output @ params["w_attn"].T + params["b_attn"]
    score = jnp.einsum("bsh,bh->bs", enc_w, h_new)
    alpha = jax.nn.softmax(score, axis=1)
    attn = jnp.einsum("bs,bsh->bh", alpha, enc_w)
    dec_out = h_new @ params["w_out"].T + params["b_out"]
    return dec_out, attn, h_new[None]


def init_params(key, output_size, hidden_size, input_size):
    k = 1.0 / float(np.sqrt(hidden_size))
    keys = jax.random.split(key, 8)

    def u(kk, shape):
        return jax.random.uniform(kk, shape, jnp.float32, minval=-k, maxval=k)

    return {
        # nn.GRU(hidden_size + input_size, hidden_size)
        "w_ih": u(keys[0], (3 * hidden_size, hidden_size + input_size)),
        "w_hh": u(keys[1], (3 * hidden_size, hidden_size)),
        "b_ih": u(keys[2], (3 * hidden_size,)),
        "b_hh": u(keys[3], (3 * hidden_size,)),
        # Luong "general" attention Linear(hidden_size, hidden_size)
        "w_attn": u(keys[4], (hidden_size, hidden_size)),
        "b_attn": u(keys[5], (hidden_size,)),
        # self.out = nn.Linear(hidden_size, output_size)
        "w_out": u(keys[6], (output_size, hidden_size)),
        "b_out": u(keys[7], (output_size,)),
        # TODO(synk): self.fc (Linear(2H,H)) and self.dropout are unused in forward(); omitted.
    }


if __name__ == "__main__":
    B, I, H, O, S, T = 2, 16, 32, 8, 8, 4   # batch, input, hidden, output, enc seq, decode steps

    key = jax.random.PRNGKey(0)
    pkey, dkey = jax.random.split(key)
    params = init_params(pkey, O, H, I)
    prep = prepare_params(params)                      # one-time (hoisted out of decode loop)

    k1, k2, k3, k4, k5 = jax.random.split(dkey, 5)
    dec_input = jax.random.normal(k1, (B, I), jnp.float32)
    lasts = jax.random.normal(k2, (1, B, H), jnp.float32)      # previous GRU hidden
    lastc = jax.random.normal(k3, (B, H), jnp.float32)         # previous context vector
    enc_output = jax.random.normal(k4, (B, S, H), jnp.float32)
    dec_inputs_seq = jax.random.normal(k5, (T, B, I), jnp.float32)

    enc_w = precompute_enc_w(prep, enc_output)         # loop-invariant, computed ONCE

    # ---- single step (matches Decoder.forward) ----
    out = jax.block_until_ready(decoder_forward(prep, dec_input, lasts, lastc, enc_w))
    ref = decoder_forward_ref(params, dec_input, lasts, lastc, enc_output)
    np.testing.assert_allclose(np.asarray(out[0]), np.asarray(ref[0]), rtol=1e-5, atol=1e-5)
    np.testing.assert_allclose(np.asarray(out[2]), np.asarray(ref[2]), rtol=1e-5, atol=1e-5)
    # attn uses the approximate (EUP) reciprocal in the softmax -> looser tolerance
    np.testing.assert_allclose(np.asarray(out[1]), np.asarray(ref[1]), rtol=1e-2, atol=1e-2)

    # ---- fused multi-step decode (grid over T, state carried in VMEM scratch) ----
    dec_seq, ctx_seq, hid_fin = jax.block_until_ready(
        decoder_decode(prep, dec_inputs_seq, lasts, lastc, enc_w))
    h_r, c_r = lasts, lastc
    dec_ref, ctx_ref = [], []
    for t in range(T):
        d, a, h_r = decoder_forward_ref(params, dec_inputs_seq[t], h_r, c_r, enc_output)
        c_r = a
        dec_ref.append(d)
        ctx_ref.append(a)
    np.testing.assert_allclose(np.asarray(dec_seq), np.asarray(jnp.stack(dec_ref)),
                               rtol=2e-2, atol=2e-2)
    np.testing.assert_allclose(np.asarray(ctx_seq), np.asarray(jnp.stack(ctx_ref)),
                               rtol=2e-2, atol=2e-2)
    np.testing.assert_allclose(np.asarray(hid_fin), np.asarray(h_r), rtol=2e-2, atol=2e-2)

    print("KERNEL_OK")
</pallas_src>

<mosaic_0001>
module attributes {stable_mosaic.version = 11 : i64} {
  func.func @_decoder_step_kernel(%arg0: i32, %arg1: memref<1x2x16xf32, #tpu.memory_space<vmem>>, %arg2: memref<2x32xf32, #tpu.memory_space<vmem>>, %arg3: memref<2x32xf32, #tpu.memory_space<vmem>>, %arg4: memref<2x8x32xf32, #tpu.memory_space<vmem>>, %arg5: memref<80x128xf32, #tpu.memory_space<vmem>>, %arg6: memref<1x128xf32, #tpu.memory_space<vmem>>, %arg7: memref<32x8xf32, #tpu.memory_space<vmem>>, %arg8: memref<1x8xf32, #tpu.memory_space<vmem>>, %arg9: memref<1x2x8xf32, #tpu.memory_space<vmem>>, %arg10: memref<1x2x32xf32, #tpu.memory_space<vmem>>, %arg11: memref<2x32xf32, #tpu.memory_space<vmem>>, %arg12: memref<2x80xf32, #tpu.memory_space<vmem>>, %arg13: memref<2x32xf32, #tpu.memory_space<vmem>>, %arg14: memref<2x32xf32, #tpu.memory_space<vmem>>) attributes {dimension_semantics = [#tpu.dimension_semantics<arbitrary>], iteration_bounds = array<i64: 1>, scalar_prefetch = 0 : i64, scratch_operands = 3 : i64, tpu.core_type = #tpu.core_type<tc>, window_params = [{transform_indices = @transform_0, window_bounds = array<i64: 1, 2, 16>}, {pipeline_mode = #tpu.pipeline_mode<synchronous>, transform_indices = @transform_1, window_bounds = array<i64: 2, 32>}, {pipeline_mode = #tpu.pipeline_mode<synchronous>, transform_indices = @transform_2, window_bounds = array<i64: 2, 32>}, {pipeline_mode = #tpu.pipeline_mode<synchronous>, transform_indices = @transform_3, window_bounds = array<i64: 2, 8, 32>}, {pipeline_mode = #tpu.pipeline_mode<synchronous>, transform_indices = @transform_4, window_bounds = array<i64: 80, 128>}, {pipeline_mode = #tpu.pipeline_mode<synchronous>, transform_indices = @transform_5, window_bounds = array<i64: 1, 128>}, {pipeline_mode = #tpu.pipeline_mode<synchronous>, transform_indices = @transform_6, window_bounds = array<i64: 32, 8>}, {pipeline_mode = #tpu.pipeline_mode<synchronous>, transform_indices = @transform_7, window_bounds = array<i64: 1, 8>}, {transform_indices = @transform_8, window_bounds = array<i64: 1, 2, 8>}, {transform_indices = @transform_9, window_bounds = array<i64: 1, 2, 32>}, {pipeline_mode = #tpu.pipeline_mode<synchronous>, transform_indices = @transform_10, window_bounds = array<i64: 2, 32>}]} {
    %c0_i32 = arith.constant 0 : i32
    %0 = arith.cmpi eq, %arg0, %c0_i32 : i32
    %1 = arith.extui %0 : i1 to i32
    %c0_i32_0 = arith.constant 0 : i32
    %2 = arith.cmpi ne, %1, %c0_i32_0 : i32
    scf.if %2 {
      %c0_44 = arith.constant 0 : index
      %c0_45 = arith.constant 0 : index
      %67 = vector.load %arg2[%c0_44, %c0_45] : memref<2x32xf32, #tpu.memory_space<vmem>>, vector<2x32xf32>
      %c0_46 = arith.constant 0 : index
      %c0_47 = arith.constant 0 : index
      %68 = vector.load %arg13[%c0_46, %c0_47] : memref<2x32xf32, #tpu.memory_space<vmem>>, vector<2x32xf32>
      tpu.vector_store %arg13[%c0_46, %c0_47], %67 {strides = array<i32>} : memref<2x32xf32, #tpu.memory_space<vmem>>, vector<2x32xf32>,
      %c0_48 = arith.constant 0 : index
      %c0_49 = arith.constant 0 : index
      %69 = vector.load %arg3[%c0_48, %c0_49] : memref<2x32xf32, #tpu.memory_space<vmem>>, vector<2x32xf32>
      %c0_50 = arith.constant 0 : index
      %c0_51 = arith.constant 0 : index
      %70 = vector.load %arg14[%c0_50, %c0_51] : memref<2x32xf32, #tpu.memory_space<vmem>>, vector<2x32xf32>
      tpu.vector_store %arg14[%c0_50, %c0_51], %69 {strides = array<i32>} : memref<2x32xf32, #tpu.memory_space<vmem>>, vector<2x32xf32>,
    } else {
    }
    %c0 = arith.constant 0 : index
    %c0_1 = arith.constant 0 : index
    %3 = vector.load %arg13[%c0, %c0_1] : memref<2x32xf32, #tpu.memory_space<vmem>>, vector<2x32xf32>
    %c0_2 = arith.constant 0 : index
    %c0_3 = arith.constant 0 : index
    %c0_4 = arith.constant 0 : index
    %4 = vector.load %arg1[%c0_2, %c0_3, %c0_4] : memref<1x2x16xf32, #tpu.memory_space<vmem>>, vector<1x2x16xf32>
    %5 = vector.shape_cast %4 : vector<1x2x16xf32> to vector<2x16xf32>
    %c0_5 = arith.constant 0 : index
    %c0_6 = arith.constant 0 : index
    %6 = vector.load %arg12[%c0_5, %c0_6] : memref<2x80xf32, #tpu.memory_space<vmem>>, vector<2x16xf32>
    tpu.vector_store %arg12[%c0_5, %c0_6], %5 {strides = array<i32>} : memref<2x80xf32, #tpu.memory_space<vmem>>, vector<2x16xf32>,
    %c0_7 = arith.constant 0 : index
    %c0_8 = arith.constant 0 : index
    %7 = vector.load %arg14[%c0_7, %c0_8] : memref<2x32xf32, #tpu.memory_space<vmem>>, vector<2x32xf32>
    %c0_9 = arith.constant 0 : index
    %c16 = arith.constant 16 : index
    %8 = vector.load %arg12[%c0_9, %c16] : memref<2x80xf32, #tpu.memory_space<vmem>>, vector<2x32xf32>
    tpu.vector_store %arg12[%c0_9, %c16], %7 {strides = array<i32>} : memref<2x80xf32, #tpu.memory_space<vmem>>, vector<2x32xf32>,
    %c0_10 = arith.constant 0 : index
    %c48 = arith.constant 48 : index
    %9 = vector.load %arg12[%c0_10, %c48] : memref<2x80xf32, #tpu.memory_space<vmem>>, vector<2x32xf32>
    tpu.vector_store %arg12[%c0_10, %c48], %3 {strides = array<i32>} : memref<2x80xf32, #tpu.memory_space<vmem>>, vector<2x32xf32>,
    %c0_11 = arith.constant 0 : index
    %c0_12 = arith.constant 0 : index
    %10 = vector.load %arg12[%c0_11, %c0_12] : memref<2x80xf32, #tpu.memory_space<vmem>>, vector<2x80xf32>
    %c0_13 = arith.constant 0 : index
    %c0_14 = arith.constant 0 : index
    %11 = vector.load %arg5[%c0_13, %c0_14] : memref<80x128xf32, #tpu.memory_space<vmem>>, vector<80x128xf32>
    %cst = arith.constant dense<0.000000e+00> : vector<2x128xf32>
    %12 = tpu.matmul %10, %11, %cst {dimension_numbers = #tpu.dot_dimension_numbers<[1], [0], [0], [1], [0, 0, 1, 1], [], []>} : vector<2x80xf32>, vector<80x128xf32>, vector<2x128xf32> -> vector<2x128xf32>
    %c0_15 = arith.constant 0 : index
    %c0_16 = arith.constant 0 : index
    %13 = vector.load %arg6[%c0_15, %c0_16] : memref<1x128xf32, #tpu.memory_space<vmem>>, vector<1x128xf32>
    %14 = vector.broadcast %13 : vector<1x128xf32> to vector<2x128xf32>
    %15 = arith.addf %12, %14 : vector<2x128xf32>
    %16 = vector.extract_strided_slice %15 {offsets = [0, 0], sizes = [2, 32], strides = [1, 1]} : vector<2x128xf32> to vector<2x32xf32>
    %17 = arith.negf %16 : vector<2x32xf32>
    %18 = math.exp %17 : vector<2x32xf32>
    %cst_17 = arith.constant 1.000000e+00 : f32
    %19 = vector.broadcast %cst_17 : f32 to vector<2x32xf32>
    %20 = arith.addf %19, %18 : vector<2x32xf32>
    %21 = arith.divf %19, %20 : vector<2x32xf32>
    %22 = vector.extract_strided_slice %15 {offsets = [0, 32], sizes = [2, 32], strides = [1, 1]} : vector<2x128xf32> to vector<2x32xf32>
    %23 = arith.negf %22 : vector<2x32xf32>
    %24 = math.exp %23 : vector<2x32xf32>
    %cst_18 = arith.constant 1.000000e+00 : f32
    %25 = vector.broadcast %cst_18 : f32 to vector<2x32xf32>
    %26 = arith.addf %25, %24 : vector<2x32xf32>
    %27 = arith.divf %25, %26 : vector<2x32xf32>
    %28 = vector.extract_strided_slice %15 {offsets = [0, 64], sizes = [2, 32], strides = [1, 1]} : vector<2x128xf32> to vector<2x32xf32>
    %29 = vector.extract_strided_slice %15 {offsets = [0, 96], sizes = [2, 32], strides = [1, 1]} : vector<2x128xf32> to vector<2x32xf32>
    %30 = arith.mulf %21, %29 : vector<2x32xf32>
    %31 = arith.addf %28, %30 : vector<2x32xf32>
    %32 = math.tanh %31 : vector<2x32xf32>
    %cst_19 = arith.constant 1.000000e+00 : f32
    %33 = vector.broadcast %cst_19 : f32 to vector<2x32xf32>
    %34 = arith.subf %33, %27 : vector<2x32xf32>
    %35 = arith.mulf %34, %32 : vector<2x32xf32>
    %36 = arith.mulf %27, %3 : vector<2x32xf32>
    %37 = arith.addf %35, %36 : vector<2x32xf32>
    %c0_20 = arith.constant 0 : index
    %c0_21 = arith.constant 0 : index
    %c0_22 = arith.constant 0 : index
    %38 = vector.load %arg4[%c0_20, %c0_21, %c0_22] : memref<2x8x32xf32, #tpu.memory_space<vmem>>, vector<2x8x32xf32>
    %39 = vector.shape_cast %37 : vector<2x32xf32> to vector<2x1x32xf32>
    "tpu.trace_start"() <{level = 10 : i32, message = "bqh,bsh->bqs"}> : () -> ()
    %cst_23 = arith.constant dense<0.000000e+00> : vector<2x1x8xf32>
    %40 = tpu.matmul %39, %38, %cst_23 {dimension_numbers = #tpu.dot_dimension_numbers<[2], [2], [1], [1], [0, 0, 0, 1, 1, 1], [0], [0]>} : vector<2x1x32xf32>, vector<2x8x32xf32>, vector<2x1x8xf32> -> vector<2x1x8xf32>
    "tpu.trace_stop"() : () -> ()
    %cst_24 = arith.constant dense<0xFF800000> : vector<2x1xf32>
    %41 = vector.multi_reduction <maximumf>, %40, %cst_24 [2] : vector<2x1x8xf32> to vector<2x1xf32>
    %42 = vector.shape_cast %41 : vector<2x1xf32> to vector<2x1x1xf32>
    %43 = vector.broadcast %42 : vector<2x1x1xf32> to vector<2x1x8xf32>
    %44 = arith.subf %40, %43 : vector<2x1x8xf32>
    %45 = math.exp %44 : vector<2x1x8xf32>
    %cst_25 = arith.constant dense<0.000000e+00> : vector<2x1xf32>
    %46 = vector.multi_reduction <add>, %45, %cst_25 [2] : vector<2x1x8xf32> to vector<2x1xf32>
    %47 = vector.shape_cast %46 : vector<2x1xf32> to vector<2x1x1xf32>
    %48 = tpu.reciprocal %47 {approx = true} : vector<2x1x1xf32> -> vector<2x1x1xf32>
    %49 = vector.broadcast %48 : vector<2x1x1xf32> to vector<2x1x8xf32>
    %50 = arith.mulf %45, %49 : vector<2x1x8xf32>
    "tpu.trace_start"() <{level = 10 : i32, message = "bqs,bsh->bqh"}> : () -> ()
    %cst_26 = arith.constant dense<0.000000e+00> : vector<2x1x32xf32>
    %51 = tpu.matmul %50, %38, %cst_26 {dimension_numbers = #tpu.dot_dimension_numbers<[2], [1], [1], [2], [0, 0, 0, 1, 1, 2], [0], [0]>} : vector<2x1x8xf32>, vector<2x8x32xf32>, vector<2x1x32xf32> -> vector<2x1x32xf32>
    "tpu.trace_stop"() : () -> ()
    %52 = vector.shape_cast %51 : vector<2x1x32xf32> to vector<2x32xf32>
    %c0_27 = arith.constant 0 : index
    %c0_28 = arith.constant 0 : index
    %53 = vector.load %arg7[%c0_27, %c0_28] : memref<32x8xf32, #tpu.memory_space<vmem>>, vector<32x8xf32>
    %cst_29 = arith.constant dense<0.000000e+00> : vector<2x8xf32>
    %54 = tpu.matmul %37, %53, %cst_29 {dimension_numbers = #tpu.dot_dimension_numbers<[1], [0], [0], [1], [0, 0, 1, 1], [], []>} : vector<2x32xf32>, vector<32x8xf32>, vector<2x8xf32> -> vector<2x8xf32>
    %c0_30 = arith.constant 0 : index
    %c0_31 = arith.constant 0 : index
    %55 = vector.load %arg8[%c0_30, %c0_31] : memref<1x8xf32, #tpu.memory_space<vmem>>, vector<1x8xf32>
    %56 = vector.broadcast %55 : vector<1x8xf32> to vector<2x8xf32>
    %57 = arith.addf %54, %56 : vector<2x8xf32>
    %c0_32 = arith.constant 0 : index
    %c0_33 = arith.constant 0 : index
    %c0_34 = arith.constant 0 : index
    %58 = vector.load %arg9[%c0_32, %c0_33, %c0_34] : memref<1x2x8xf32, #tpu.memory_space<vmem>>, vector<1x2x8xf32>
    %59 = vector.shape_cast %58 : vector<1x2x8xf32> to vector<2x8xf32>
    %60 = vector.shape_cast %57 : vector<2x8xf32> to vector<1x2x8xf32>
    tpu.vector_store %arg9[%c0_32, %c0_33, %c0_34], %60 {strides = array<i32>} : memref<1x2x8xf32, #tpu.memory_space<vmem>>, vector<1x2x8xf32>,
    %c0_35 = arith.constant 0 : index
    %c0_36 = arith.constant 0 : index
    %c0_37 = arith.constant 0 : index
    %61 = vector.load %arg10[%c0_35, %c0_36, %c0_37] : memref<1x2x32xf32, #tpu.memory_space<vmem>>, vector<1x2x32xf32>
    %62 = vector.shape_cast %61 : vector<1x2x32xf32> to vector<2x32xf32>
    %63 = vector.shape_cast %52 : vector<2x32xf32> to vector<1x2x32xf32>
    tpu.vector_store %arg10[%c0_35, %c0_36, %c0_37], %63 {strides = array<i32>} : memref<1x2x32xf32, #tpu.memory_space<vmem>>, vector<1x2x32xf32>,
    %c0_38 = arith.constant 0 : index
    %c0_39 = arith.constant 0 : index
    %64 = vector.load %arg11[%c0_38, %c0_39] : memref<2x32xf32, #tpu.memory_space<vmem>>, vector<2x32xf32>
    tpu.vector_store %arg11[%c0_38, %c0_39], %37 {strides = array<i32>} : memref<2x32xf32, #tpu.memory_space<vmem>>, vector<2x32xf32>,
    %c0_40 = arith.constant 0 : index
    %c0_41 = arith.constant 0 : index
    %65 = vector.load %arg13[%c0_40, %c0_41] : memref<2x32xf32, #tpu.memory_space<vmem>>, vector<2x32xf32>
    tpu.vector_store %arg13[%c0_40, %c0_41], %37 {strides = array<i32>} : memref<2x32xf32, #tpu.memory_space<vmem>>, vector<2x32xf32>,
    %c0_42 = arith.constant 0 : index
    %c0_43 = arith.constant 0 : index
    %66 = vector.load %arg14[%c0_42, %c0_43] : memref<2x32xf32, #tpu.memory_space<vmem>>, vector<2x32xf32>
    tpu.vector_store %arg14[%c0_42, %c0_43], %52 {strides = array<i32>} : memref<2x32xf32, #tpu.memory_space<vmem>>, vector<2x32xf32>,
    return
  }
  func.func @transform_0(%arg0: i32) -> (i32, i32, i32) {
    %c0_i32 = arith.constant 0 : i32
    %c0_i32_0 = arith.constant 0 : i32
    %c0_i32_1 = arith.constant 0 : i32
    return %arg0, %c0_i32, %c0_i32_0 : i32, i32, i32
  }
  func.func @transform_1(%arg0: i32) -> (i32, i32) {
    %c0_i32 = arith.constant 0 : i32
    %c0_i32_0 = arith.constant 0 : i32
    %c0_i32_1 = arith.constant 0 : i32
    return %c0_i32, %c0_i32_0 : i32, i32
  }
  func.func @transform_2(%arg0: i32) -> (i32, i32) {
    %c0_i32 = arith.constant 0 : i32
    %c0_i32_0 = arith.constant 0 : i32
    %c0_i32_1 = arith.constant 0 : i32
    return %c0_i32, %c0_i32_0 : i32, i32
  }
  func.func @transform_3(%arg0: i32) -> (i32, i32, i32) {
    %c0_i32 = arith.constant 0 : i32
    %c0_i32_0 = arith.constant 0 : i32
    %c0_i32_1 = arith.constant 0 : i32
    %c0_i32_2 = arith.constant 0 : i32
    return %c0_i32, %c0_i32_0, %c0_i32_1 : i32, i32, i32
  }
  func.func @transform_4(%arg0: i32) -> (i32, i32) {
    %c0_i32 = arith.constant 0 : i32
    %c0_i32_0 = arith.constant 0 : i32
    %c0_i32_1 = arith.constant 0 : i32
    return %c0_i32, %c0_i32_0 : i32, i32
  }
  func.func @transform_5(%arg0: i32) -> (i32, i32) {
    %c0_i32 = arith.constant 0 : i32
    %c0_i32_0 = arith.constant 0 : i32
    %c0_i32_1 = arith.constant 0 : i32
    return %c0_i32, %c0_i32_0 : i32, i32
  }
  func.func @transform_6(%arg0: i32) -> (i32, i32) {
    %c0_i32 = arith.constant 0 : i32
    %c0_i32_0 = arith.constant 0 : i32
    %c0_i32_1 = arith.constant 0 : i32
    return %c0_i32, %c0_i32_0 : i32, i32
  }
  func.func @transform_7(%arg0: i32) -> (i32, i32) {
    %c0_i32 = arith.constant 0 : i32
    %c0_i32_0 = arith.constant 0 : i32
    %c0_i32_1 = arith.constant 0 : i32
    return %c0_i32, %c0_i32_0 : i32, i32
  }
  func.func @transform_8(%arg0: i32) -> (i32, i32, i32) {
    %c0_i32 = arith.constant 0 : i32
    %c0_i32_0 = arith.constant 0 : i32
    %c0_i32_1 = arith.constant 0 : i32
    return %arg0, %c0_i32, %c0_i32_0 : i32, i32, i32
  }
  func.func @transform_9(%arg0: i32) -> (i32, i32, i32) {
    %c0_i32 = arith.constant 0 : i32
    %c0_i32_0 = arith.constant 0 : i32
    %c0_i32_1 = arith.constant 0 : i32
    return %arg0, %c0_i32, %c0_i32_0 : i32, i32, i32
  }
  func.func @transform_10(%arg0: i32) -> (i32, i32) {
    %c0_i32 = arith.constant 0 : i32
    %c0_i32_0 = arith.constant 0 : i32
    %c0_i32_1 = arith.constant 0 : i32
    return %c0_i32, %c0_i32_0 : i32, i32
  }
}

</mosaic_0001>

<llo_original>
// kernel: tpu_custom_call.1
$region0: #{tpu_custom_call.1}
  #allocation0 [shape = 'u32[]', space=smem, size = 0x4, offset = 0x4, fixed_abs, tag = 'smem constant byte address 0x4 - core index']
  #allocation1 [shape = 'u32[144,128]{1,0:T(1,128)}', space=vmem, size = 0x12000, scoped, tag = 'internal scratch']
  #allocation2 [shape = 'f32[2,80]{1,0:T(2,128)}', space=vmem, size = 0x400, scoped, tag = 'scratch operand']
  #allocation3 [shape = 'f32[2,32]{1,0:T(2,128)}', space=vmem, size = 0x400, scoped, tag = 'scratch operand']
  #allocation4 [shape = 'f32[2,32]{1,0:T(2,128)}', space=vmem, size = 0x400, scoped, tag = 'scratch operand']
  %s0 = inlined_call_operand.vmem [shape: f32[1,2,16], index: 0, kind: input, shape index: {}]
  %s1 = inlined_call_operand.vmem [shape: f32[2,32], index: 1, kind: input, shape index: {}]
  %s2 = inlined_call_operand.vmem [shape: f32[2,32], index: 2, kind: input, shape index: {}]
  %s3 = inlined_call_operand.vmem [shape: f32[2,8,32], index: 3, kind: input, shape index: {}]
  %s4 = inlined_call_operand.hbm [shape: f32[80,128], index: 4, kind: input, shape index: {}]
  %s5 = inlined_call_operand.vmem [shape: f32[1,128], index: 5, kind: input, shape index: {}]
  %s6 = inlined_call_operand.vmem [shape: f32[32,8], index: 6, kind: input, shape index: {}]
  %s7 = inlined_call_operand.vmem [shape: f32[1,8], index: 7, kind: input, shape index: {}]
  %s8 = inlined_call_operand.hbm [shape: f32[1,2,8], index: 8, kind: output, shape index: {0}]
  %s9 = inlined_call_operand.hbm [shape: f32[1,2,32], index: 9, kind: output, shape index: {1}]
  %s10 = inlined_call_operand.hbm [shape: f32[2,32], index: 10, kind: output, shape index: {2}]
  %11 = xla_tuple %s8, %s9, %s10
  %s12 = sld [smem:[#allocation0]]
  $region66: #{tpu_custom_call.1} parent=0
    _
  %s14 = ssub.s32 1, %s12
  %s15 = scalar_select 0, %s14, %s12
  $region1: #{tpu_custom_call.1} parent=0
    #allocation5 [shape = 'u8[40960]{0}', space=vmem, size = 0xa000, scoped, tag = 'input window, operand 4, single buffered']
    #allocation6 [shape = 's32[1]{0}', space=sflag, size = 0x4, scoped, tag = 'scoped memory for tpu_custom_call.1']
    #allocation7 [shape = 's32[1]{0}', space=sflag, size = 0x4, scoped, tag = 'scoped memory for tpu_custom_call.1']
    #allocation8 [shape = 'u8[1024]{0}', space=vmem, size = 0x400, scoped, tag = 'output window, operand 0, single buffered']
    #allocation9 [shape = 'u8[1024]{0}', space=vmem, size = 0x400, scoped, tag = 'output window, operand 1, single buffered']
    #allocation10 [shape = 's32[1]{0}', space=sflag, size = 0x4, scoped, tag = 'scoped memory for tpu_custom_call.1']
    #allocation11 [shape = 'u8[1024]{0}', space=vmem, size = 0x400, scoped, tag = 'output window, operand 2, single buffered']
    %16 = vsyncpa [#allocation6], 0
    %17 = vsyncpa [#allocation7], 0
    %18 = vsyncpa [#allocation10], 0
    // Predicated region
    $region2: #{tpu_custom_call.1} parent=1 // pred_check
      _
    $region3: #{tpu_custom_call.1} parent=1 // pred_check_branch
      %20 = sbr.rel (0) target = $region5
    $region4: #{tpu_custom_call.1} parent=1 // pred_region
      _
    $region5: #{tpu_custom_call.1} parent=1 // pred_fallthru
      _
    // Predicated region
    $region6: #{tpu_custom_call.1} parent=1 // pred_check
      _
    $region7: #{tpu_custom_call.1} parent=1 // pred_check_branch
      %22 = sbr.rel (0) target = $region9
    $region8: #{tpu_custom_call.1} parent=1 // pred_region
      _
    $region9: #{tpu_custom_call.1} parent=1 // pred_fallthru
      _
    // Predicated region
    $region10: #{tpu_custom_call.1} parent=1 // pred_check
      _
    $region11: #{tpu_custom_call.1} parent=1 // pred_check_branch
      %24 = sbr.rel (0) target = $region13
    $region12: #{tpu_custom_call.1} parent=1 // pred_region
      _
    $region13: #{tpu_custom_call.1} parent=1 // pred_fallthru
      _
    // Predicated region
    $region14: #{tpu_custom_call.1} parent=1 // pred_check
      _
    $region15: #{tpu_custom_call.1} parent=1 // pred_check_branch
      %26 = sbr.rel (0) target = $region17
    $region16: #{tpu_custom_call.1} parent=1 // pred_region
      _
    $region17: #{tpu_custom_call.1} parent=1 // pred_fallthru
      _
    // Predicated region
    $region18: #{tpu_custom_call.1} parent=1 // pred_check
      _
    $region19: #{tpu_custom_call.1} parent=1 // pred_check_branch
      %28 = sbr.rel (0) target = $region21
    $region20: #{tpu_custom_call.1} parent=1 // pred_region
      %s30 = ssub.s32 1280, 1280
      %31 = vsyncadd [#allocation6], %s30
      %s32 = sshll.u32 [#allocation5], 4
      %s33 = int_to_ptr.vmem [resolvable:$true] %s32
      %38 = dma.hbm_to_vmem [thread:$0]  %s4, 1280, %s33, [#allocation6], 128, 128, 8
    $region21: #{tpu_custom_call.1} parent=1 // pred_fallthru
      _
    // Predicated region
    $region22: #{tpu_custom_call.1} parent=1 // pred_check
      _
    $region23: #{tpu_custom_call.1} parent=1 // pred_check_branch
      %40 = sbr.rel (0) target = $region25
    $region24: #{tpu_custom_call.1} parent=1 // pred_region
      _
    $region25: #{tpu_custom_call.1} parent=1 // pred_fallthru
      _
    // Predicated region
    $region26: #{tpu_custom_call.1} parent=1 // pred_check
      _
    $region27: #{tpu_custom_call.1} parent=1 // pred_check_branch
      %42 = sbr.rel (0) target = $region29
    $region28: #{tpu_custom_call.1} parent=1 // pred_region
      _
    $region29: #{tpu_custom_call.1} parent=1 // pred_fallthru
      _
    // Predicated region
    $region30: #{tpu_custom_call.1} parent=1 // pred_check
      _
    $region31: #{tpu_custom_call.1} parent=1 // pred_check_branch
      %44 = sbr.rel (0) target = $region33
    $region32: #{tpu_custom_call.1} parent=1 // pred_region
      _
    $region33: #{tpu_custom_call.1} parent=1 // pred_fallthru
      _
    // Predicated region
    $region34: #{tpu_custom_call.1} parent=1 // pred_check
      _
    $region35: #{tpu_custom_call.1} parent=1 // pred_check_branch
      %46 = sbr.rel (0) target = $region37
    $region36: #{tpu_custom_call.1} parent=1 // pred_region
      %47 = dma.done [#allocation6], 1280
    $region37: #{tpu_custom_call.1} parent=1 // pred_fallthru
      _
    %p48 = scmp.eq.s32.totalorder 0, 0
    // Predicated region
    $region38: #{tpu_custom_call.1} parent=1 // pred_check
      %p49 = pneg %p48
    $region39: #{tpu_custom_call.1} parent=1 // pred_check_branch
      %51 = sbr.rel (%p49) target = $region41
    $region40: #{tpu_custom_call.1} parent=1 // pred_region
      %v52 = vld [vmem:[%s1] sm:$0x3]
      %vm53 = vcmask 254976
      %54 = vst.msk [vmem:[#allocation3] sm:$0x3] %vm53, %v52
      %v55 = vld [vmem:[%s2] sm:$0x3]
      %56 = vst.msk [vmem:[#allocation4] sm:$0x3] %vm53, %v55
    $region41: #{tpu_custom_call.1} parent=1 // pred_fallthru
      _
    %v57 = vld [vmem:[#allocation3] sm:$0x3]
    %v58 = vld [vmem:[%s0] sm:$0x3]
    %vm59 = vcmask 123904
    %60 = vst.msk [vmem:[#allocation2] sm:$0x3] %vm59, %v58
    %v61 = vld [vmem:[#allocation4] sm:$0x3]
    %63 = vrot.lane.b32.xlu0 %v61, 16
    %v64 = vpop.permute.xlu0 %63
    %vm66 = vcmask 386176
    %67 = vst.msk [vmem:[#allocation2] sm:$0x3] %vm66, %v64
    %69 = vrot.lane.b32.xlu0 %v57, 48
    %v70 = vpop.permute.xlu0 %69
    %vm72 = vcmask 648576
    %73 = vst.msk [vmem:[#allocation2] sm:$0x3] %vm72, %v70
    %v74 = vld [vmem:[#allocation2] sm:$0x3]
    %v75 = vld [vmem:[#allocation5] sm:$0xff]
    %v76 = vld [vmem:[#allocation5 + $0x8] sm:$0xff]
    %v77 = vld [vmem:[#allocation5 + $0x10] sm:$0xff]
    %v78 = vld [vmem:[#allocation5 + $0x18] sm:$0xff]
    %v79 = vld [vmem:[#allocation5 + $0x20] sm:$0xff]
    %v80 = vld [vmem:[#allocation5 + $0x28] sm:$0xff]
    %v81 = vld [vmem:[#allocation5 + $0x30] sm:$0xff]
    %v82 = vld [vmem:[#allocation5 + $0x38] sm:$0xff]
    %v83 = vld [vmem:[#allocation5 + $0x40] sm:$0xff]
    %v84 = vld [vmem:[#allocation5 + $0x48] sm:$0xff]
    %v85 = vld [vmem:[%s5] sm:$0x1]
    %v87 = vlaneseq
    %v88 = vshrl.u32 %v87, 7
    %v89 = vsub.s32 0, %v88
    %v90 = vrot.slane %v85, %v89
    %vm92 = vcmask 654336
    %v94 = vsel %vm92, %v74, 0
    %96 = vmatprep.subr.mxu0 0.0
    %97 = vmatpush1.msra.mxu0 0.0
    %98 = vmatprep.subr.mxu0 0.0
    %99 = vmatpush1.msra.mxu0 0.0
    %100 = vmatprep.subr.mxu0 0.0
    %101 = vmatpush1.msra.mxu0 0.0
    %102 = vmatprep.subr.mxu0 0.0
    %103 = vmatpush1.msra.mxu0 0.0
    %104 = vmatprep.subr.mxu0 0.0
    %105 = vmatpush1.msra.mxu0 0.0
    %106 = vmatprep.subr.mxu0 0.0
    %107 = vmatpush1.msra.mxu0 0.0
    %108 = vmatprep.subr.mxu0 0.0
    %109 = vmatpush1.msra.mxu0 %v84
    %110 = vmatprep.subr.mxu0 0.0
    %111 = vmatpush1.msra.mxu0 %v83
    %112 = vmatprep.subr.mxu0 0.0
    %113 = vmatpush1.msra.mxu0 %v82
    %114 = vmatprep.subr.mxu0 0.0
    %115 = vmatpush1.msra.mxu0 %v81
    %116 = vmatprep.subr.mxu0 0.0
    %117 = vmatpush1.msra.mxu0 %v80
    %118 = vmatprep.subr.mxu0 0.0
    %119 = vmatpush1.msra.mxu0 %v79
    %120 = vmatprep.subr.mxu0 0.0
    %121 = vmatpush1.msra.mxu0 %v78
    %122 = vmatprep.subr.mxu0 0.0
    %123 = vmatpush1.msra.mxu0 %v77
    %124 = vmatprep.subr.mxu0 0.0
    %125 = vmatpush1.msra.mxu0 %v76
    %126 = vmatprep.subr.mxu0 0.0
    %127 = vmatpush1.msra.mxu0 %v75
    %128 = vmatprep.subr.mxu0 0.0
    %129 = vmatpush2.msra.mxu0 0.0
    %130 = vmatprep.subr.mxu0 0.0
    %131 = vmatpush2.msra.mxu0 0.0
    %132 = vmatprep.subr.mxu0 0.0
    %133 = vmatpush2.msra.mxu0 0.0
    %134 = vmatprep.subr.mxu0 0.0
    %135 = vmatpush2.msra.mxu0 0.0
    %136 = vmatprep.subr.mxu0 0.0
    %137 = vmatpush2.msra.mxu0 0.0
    %138 = vmatprep.subr.mxu0 0.0
    %139 = vmatpush2.msra.mxu0 0.0
    %140 = vmatprep.subr.mxu0 0.0
    %141 = vmatpush2.msra.mxu0 0.0
    %142 = vmatprep.subr.mxu0 0.0
    %143 = vmatpush2.msra.mxu0 0.0
    %144 = vmatprep.subr.mxu0 0.0
    %145 = vmatpush2.msra.mxu0 0.0
    %146 = vmatprep.subr.mxu0 0.0
    %147 = vmatpush2.msra.mxu0 0.0
    %148 = vmatprep.subr.mxu0 0.0
    %149 = vmatpush2.msra.mxu0 0.0
    %150 = vmatprep.subr.mxu0 0.0
    %151 = vmatpush2.msra.mxu0 0.0
    %152 = vmatprep.subr.mxu0 0.0
    %153 = vmatpush2.msra.mxu0 0.0
    %154 = vmatprep.subr.mxu0 0.0
    %155 = vmatpush2.msra.mxu0 0.0
    %156 = vmatprep.subr.mxu0 0.0
    %157 = vmatpush2.msra.mxu0 0.0
    %158 = vmatprep.subr.mxu0 0.0
    %159 = vmatpush2.msra.mxu0 0.0
    %160 = vmatprep.mubr.f32.mxu0 0.0
    %161 = vmatmul.mubr.f32.gmra.mxu0 %v94
    %v162 = vpop.f32.mrf.mxu0
    %v163 = vadd.f32 %v90, %v162
    %v164 = vpop.f32.mrf.mxu0
    %165 = vdwg.mxu0
    %v166 = vxor.u32 %v163, 2147483648
    %v167 = vmul.f32 %v166, 1.442695
    %v168 = vpow.pop %v167
    %v169 = vadd.f32 %v168, 1.0
    %v170 = vrcp.pop %v169
    %v171 = vmul.f32 1.0, %v170
    %173 = vrot.lane.b32.xlu0 %v163, 32
    %v174 = vpop.permute.xlu0 %173
    %v176 = vmul.f32 %v171, %v174
    %178 = vrot.lane.b32.xlu0 %v176, 64
    %v179 = vpop.permute.xlu0 %178
    %v181 = vadd.f32 %v163, %v179
    %v182 = vtanh.pop %v181
    %v183 = vsub.f32 1.0, %v171
    %185 = vrot.lane.b32.xlu0 %v182, 96
    %v186 = vpop.permute.xlu0 %185
    %v188 = vmul.f32 %v183, %v186
    %189 = vrot.lane.b32.xlu0 %v57, 32
    %v190 = vpop.permute.xlu0 %189
    %v192 = vmul.f32 %v171, %v190
    %v193 = vadd.f32 %v188, %v192
    %v194 = vld [vmem:[%s3] sm:$0xff]
    %v195 = vld [vmem:[%s3 + $0x8] sm:$0xff]
    %v198 = vunpack.c.l.s4 1966171168
    %v199 = vunpack.c.0.s8 %v198
    %v200 = vlaneseq
    %v201 = vshrl.u32 %v200, 7
    %v202 = vsub.s32 %v199, %v201
    %v203 = vrot.slane %v193, %v202
    %v204 = vcombine.high %v203, %v203
    %v206 = vunpack.c.l.s4 1966171168
    %v207 = vunpack.c.0.s8 %v206
    %v208 = vlaneseq
    %v209 = vshrl.u32 %v208, 7
    %v210 = vsub.s32 %v207, %v209
    %v211 = vrot.slane %v203, %v210
    %v213 = vunpack.c.l.s4 1966171168
    %v214 = vunpack.c.0.s8 %v213
    %v215 = vlaneseq
    %v216 = vshrl.u32 %v215, 7
    %v217 = vsub.s32 %v214, %v216
    %v218 = vrot.slane %v204, %v217
    %v219 = vlaneseq
    %v220 = vshrl.u32 %v219, 7
    %v221 = vsub.s32 0, %v220
    %v222 = vrot.slane %v211, %v221
    %223 = vrot.lane.b32.xlu0 %v222, 96
    %v224 = vpop.permute.xlu0 %223
    %vm225 = vcmask 261120
    %v226 = vsel %vm225, %v224, 0
    %v229 = vsel %vm225, %v194, 0
    %231 = vmatprep.subr.mxu0 0.0
    %232 = vmatpush1.xpose.msra.mxu0 0.0
    %233 = vmatprep.subr.mxu0 0.0
    %234 = vmatpush1.xpose.msra.mxu0 0.0
    %235 = vmatprep.subr.mxu0 0.0
    %236 = vmatpush1.xpose.msra.mxu0 0.0
    %237 = vmatprep.subr.mxu0 0.0
    %238 = vmatpush1.xpose.msra.mxu0 0.0
    %239 = vmatprep.subr.mxu0 0.0
    %240 = vmatpush1.xpose.msra.mxu0 0.0
    %241 = vmatprep.subr.mxu0 0.0
    %242 = vmatpush1.xpose.msra.mxu0 0.0
    %243 = vmatprep.subr.mxu0 0.0
    %244 = vmatpush1.xpose.msra.mxu0 0.0
    %245 = vmatprep.subr.mxu0 0.0
    %246 = vmatpush1.xpose.msra.mxu0 0.0
    %247 = vmatprep.subr.mxu0 0.0
    %248 = vmatpush1.xpose.msra.mxu0 0.0
    %249 = vmatprep.subr.mxu0 0.0
    %250 = vmatpush1.xpose.msra.mxu0 0.0
    %251 = vmatprep.subr.mxu0 0.0
    %252 = vmatpush1.xpose.msra.mxu0 0.0
    %253 = vmatprep.subr.mxu0 0.0
    %254 = vmatpush1.xpose.msra.mxu0 0.0
    %255 = vmatprep.subr.mxu0 0.0
    %256 = vmatpush1.xpose.msra.mxu0 0.0
    %257 = vmatprep.subr.mxu0 0.0
    %258 = vmatpush1.xpose.msra.mxu0 0.0
    %259 = vmatprep.subr.mxu0 0.0
    %260 = vmatpush1.xpose.msra.mxu0 0.0
    %261 = vmatprep.subr.mxu0 0.0
    %262 = vmatpush1.xpose.msra.mxu0 %v229
    %263 = vmatprep.subr.mxu0 0.0
    %264 = vmatpush2.xpose.msra.mxu0 0.0
    %265 = vmatprep.subr.mxu0 0.0
    %266 = vmatpush2.xpose.msra.mxu0 0.0
    %267 = vmatprep.subr.mxu0 0.0
    %268 = vmatpush2.xpose.msra.mxu0 0.0
    %269 = vmatprep.subr.mxu0 0.0
    %270 = vmatpush2.xpose.msra.mxu0 0.0
    %271 = vmatprep.subr.mxu0 0.0
    %272 = vmatpush2.xpose.msra.mxu0 0.0
    %273 = vmatprep.subr.mxu0 0.0
    %274 = vmatpush2.xpose.msra.mxu0 0.0
    %275 = vmatprep.subr.mxu0 0.0
    %276 = vmatpush2.xpose.msra.mxu0 0.0
    %277 = vmatprep.subr.mxu0 0.0
    %278 = vmatpush2.xpose.msra.mxu0 0.0
    %279 = vmatprep.subr.mxu0 0.0
    %280 = vmatpush2.xpose.msra.mxu0 0.0
    %281 = vmatprep.subr.mxu0 0.0
    %282 = vmatpush2.xpose.msra.mxu0 0.0
    %283 = vmatprep.subr.mxu0 0.0
    %284 = vmatpush2.xpose.msra.mxu0 0.0
    %285 = vmatprep.subr.mxu0 0.0
    %286 = vmatpush2.xpose.msra.mxu0 0.0
    %287 = vmatprep.subr.mxu0 0.0
    %288 = vmatpush2.xpose.msra.mxu0 0.0
    %289 = vmatprep.subr.mxu0 0.0
    %290 = vmatpush2.xpose.msra.mxu0 0.0
    %291 = vmatprep.subr.mxu0 0.0
    %292 = vmatpush2.xpose.msra.mxu0 0.0
    %293 = vmatprep.subr.mxu0 0.0
    %294 = vmatpush2.xpose.msra.mxu0 0.0
    %295 = vmatprep.mubr.f32.mxu0 0.0
    %296 = vmatmul.mubr.f32.gmra.mxu0 %v226
    %v297 = vpop.f32.mrf.mxu0
    %v298 = vadd.f32 0.0, %v297
    %v299 = vpop.f32.mrf.mxu0
    %300 = vdwg.mxu0
    %v301 = vlaneseq
    %v302 = vshrl.u32 %v301, 7
    %v303 = vsub.s32 0, %v302
    %v304 = vrot.slane %v218, %v303
    %305 = vrot.lane.b32.xlu0 %v304, 96
    %v306 = vpop.permute.xlu0 %305
    %v307 = vsel %vm225, %v306, 0
    %v310 = vsel %vm225, %v195, 0
    %312 = vmatprep.subr.mxu0 0.0
    %313 = vmatpush1.xpose.msra.mxu0 0.0
    %314 = vmatprep.subr.mxu0 0.0
    %315 = vmatpush1.xpose.msra.mxu0 0.0
    %316 = vmatprep.subr.mxu0 0.0
    %317 = vmatpush1.xpose.msra.mxu0 0.0
    %318 = vmatprep.subr.mxu0 0.0
    %319 = vmatpush1.xpose.msra.mxu0 0.0
    %320 = vmatprep.subr.mxu0 0.0
    %321 = vmatpush1.xpose.msra.mxu0 0.0
    %322 = vmatprep.subr.mxu0 0.0
    %323 = vmatpush1.xpose.msra.mxu0 0.0
    %324 = vmatprep.subr.mxu0 0.0
    %325 = vmatpush1.xpose.msra.mxu0 0.0
    %326 = vmatprep.subr.mxu0 0.0
    %327 = vmatpush1.xpose.msra.mxu0 0.0
    %328 = vmatprep.subr.mxu0 0.0
    %329 = vmatpush1.xpose.msra.mxu0 0.0
    %330 = vmatprep.subr.mxu0 0.0
    %331 = vmatpush1.xpose.msra.mxu0 0.0
    %332 = vmatprep.subr.mxu0 0.0
    %333 = vmatpush1.xpose.msra.mxu0 0.0
    %334 = vmatprep.subr.mxu0 0.0
    %335 = vmatpush1.xpose.msra.mxu0 0.0
    %336 = vmatprep.subr.mxu0 0.0
    %337 = vmatpush1.xpose.msra.mxu0 0.0
    %338 = vmatprep.subr.mxu0 0.0
    %339 = vmatpush1.xpose.msra.mxu0 0.0
    %340 = vmatprep.subr.mxu0 0.0
    %341 = vmatpush1.xpose.msra.mxu0 0.0
    %342 = vmatprep.subr.mxu0 0.0
    %343 = vmatpush1.xpose.msra.mxu0 %v310
    %344 = vmatprep.subr.mxu0 0.0
    %345 = vmatpush2.xpose.msra.mxu0 0.0
    %346 = vmatprep.subr.mxu0 0.0
    %347 = vmatpush2.xpose.msra.mxu0 0.0
    %348 = vmatprep.subr.mxu0 0.0
    %349 = vmatpush2.xpose.msra.mxu0 0.0
    %350 = vmatprep.subr.mxu0 0.0
    %351 = vmatpush2.xpose.msra.mxu0 0.0
    %352 = vmatprep.subr.mxu0 0.0
    %353 = vmatpush2.xpose.msra.mxu0 0.0
    %354 = vmatprep.subr.mxu0 0.0
    %355 = vmatpush2.xpose.msra.mxu0 0.0
    %356 = vmatprep.subr.mxu0 0.0
    %357 = vmatpush2.xpose.msra.mxu0 0.0
    %358 = vmatprep.subr.mxu0 0.0
    %359 = vmatpush2.xpose.msra.mxu0 0.0
    %360 = vmatprep.subr.mxu0 0.0
    %361 = vmatpush2.xpose.msra.mxu0 0.0
    %362 = vmatprep.subr.mxu0 0.0
    %363 = vmatpush2.xpose.msra.mxu0 0.0
    %364 = vmatprep.subr.mxu0 0.0
    %365 = vmatpush2.xpose.msra.mxu0 0.0
    %366 = vmatprep.subr.mxu0 0.0
    %367 = vmatpush2.xpose.msra.mxu0 0.0
    %368 = vmatprep.subr.mxu0 0.0
    %369 = vmatpush2.xpose.msra.mxu0 0.0
    %370 = vmatprep.subr.mxu0 0.0
    %371 = vmatpush2.xpose.msra.mxu0 0.0
    %372 = vmatprep.subr.mxu0 0.0
    %373 = vmatpush2.xpose.msra.mxu0 0.0
    %374 = vmatprep.subr.mxu0 0.0
    %375 = vmatpush2.xpose.msra.mxu0 0.0
    %376 = vmatprep.mubr.f32.mxu0 0.0
    %377 = vmatmul.mubr.f32.gmra.mxu0 %v307
    %v378 = vpop.f32.mrf.mxu0
    %v379 = vadd.f32 0.0, %v378
    %v380 = vpop.f32.mrf.mxu0
    %381 = vdwg.mxu0
    %vm382 = vcmask 57344
    %v383 = vsel %vm382, %v298, -inf
    %384 = vmax.xlane.f32.xlu0 %v383
    %v385 = vpop.xlane.xlu0 %384
    %v386 = vsel %vm382, %v379, -inf
    %387 = vmax.xlane.f32.xlu0 %v386
    %v388 = vpop.xlane.xlu0 %387
    %v389 = vsub.f32 %v298, %v385
    %v390 = vsub.f32 %v379, %v388
    %v391 = vmul.f32 %v389, 1.442695
    %v392 = vpow.pop %v391
    %v393 = vmul.f32 %v390, 1.442695
    %v394 = vpow.pop %v393
    %v395 = vsel %vm382, %v392, 0.0
    %396 = vadd.xlane.f32.xlu0 %v395
    %v397 = vpop.xlane.xlu0 %396
    %v398 = vsel %vm382, %v394, 0.0
    %399 = vadd.xlane.f32.xlu0 %v398
    %v400 = vpop.xlane.xlu0 %399
    %v401 = vrcp.pop %v397
    %v402 = vrcp.pop %v400
    %v403 = vmul.f32 %v392, %v401
    %v404 = vmul.f32 %v394, %v402
    %vm405 = vcmask 64512
    %v407 = vsel %vm405, %v403, 0
    %409 = vmatprep.subr.mxu0 0.0
    %410 = vmatpush1.msra.mxu0 0.0
    %411 = vmatprep.subr.mxu0 0.0
    %412 = vmatpush1.msra.mxu0 0.0
    %413 = vmatprep.subr.mxu0 0.0
    %414 = vmatpush1.msra.mxu0 0.0
    %415 = vmatprep.subr.mxu0 0.0
    %416 = vmatpush1.msra.mxu0 0.0
    %417 = vmatprep.subr.mxu0 0.0
    %418 = vmatpush1.msra.mxu0 0.0
    %419 = vmatprep.subr.mxu0 0.0
    %420 = vmatpush1.msra.mxu0 0.0
    %421 = vmatprep.subr.mxu0 0.0
    %422 = vmatpush1.msra.mxu0 0.0
    %423 = vmatprep.subr.mxu0 0.0
    %424 = vmatpush1.msra.mxu0 0.0
    %425 = vmatprep.subr.mxu0 0.0
    %426 = vmatpush1.msra.mxu0 0.0
    %427 = vmatprep.subr.mxu0 0.0
    %428 = vmatpush1.msra.mxu0 0.0
    %429 = vmatprep.subr.mxu0 0.0
    %430 = vmatpush1.msra.mxu0 0.0
    %431 = vmatprep.subr.mxu0 0.0
    %432 = vmatpush1.msra.mxu0 0.0
    %433 = vmatprep.subr.mxu0 0.0
    %434 = vmatpush1.msra.mxu0 0.0
    %435 = vmatprep.subr.mxu0 0.0
    %436 = vmatpush1.msra.mxu0 0.0
    %437 = vmatprep.subr.mxu0 0.0
    %438 = vmatpush1.msra.mxu0 0.0
    %439 = vmatprep.subr.mxu0 0.0
    %440 = vmatpush1.msra.mxu0 %v194
    %441 = vmatprep.subr.mxu0 0.0
    %442 = vmatpush2.msra.mxu0 0.0
    %443 = vmatprep.subr.mxu0 0.0
    %444 = vmatpush2.msra.mxu0 0.0
    %445 = vmatprep.subr.mxu0 0.0
    %446 = vmatpush2.msra.mxu0 0.0
    %447 = vmatprep.subr.mxu0 0.0
    %448 = vmatpush2.msra.mxu0 0.0
    %449 = vmatprep.subr.mxu0 0.0
    %450 = vmatpush2.msra.mxu0 0.0
    %451 = vmatprep.subr.mxu0 0.0
    %452 = vmatpush2.msra.mxu0 0.0
    %453 = vmatprep.subr.mxu0 0.0
    %454 = vmatpush2.msra.mxu0 0.0
    %455 = vmatprep.subr.mxu0 0.0
    %456 = vmatpush2.msra.mxu0 0.0
    %457 = vmatprep.subr.mxu0 0.0
    %458 = vmatpush2.msra.mxu0 0.0
    %459 = vmatprep.subr.mxu0 0.0
    %460 = vmatpush2.msra.mxu0 0.0
    %461 = vmatprep.subr.mxu0 0.0
    %462 = vmatpush2.msra.mxu0 0.0
    %463 = vmatprep.subr.mxu0 0.0
    %464 = vmatpush2.msra.mxu0 0.0
    %465 = vmatprep.subr.mxu0 0.0
    %466 = vmatpush2.msra.mxu0 0.0
    %467 = vmatprep.subr.mxu0 0.0
    %468 = vmatpush2.msra.mxu0 0.0
    %469 = vmatprep.subr.mxu0 0.0
    %470 = vmatpush2.msra.mxu0 0.0
    %471 = vmatprep.subr.mxu0 0.0
    %472 = vmatpush2.msra.mxu0 0.0
    %473 = vmatprep.mubr.f32.mxu0 0.0
    %474 = vmatmul.mubr.f32.gmra.mxu0 %v407
    %v475 = vpop.f32.mrf.mxu0
    %v476 = vadd.f32 0.0, %v475
    %v477 = vpop.f32.mrf.mxu0
    %478 = vdwg.mxu0
    %v480 = vsel %vm405, %v404, 0
    %482 = vmatprep.subr.mxu0 0.0
    %483 = vmatpush1.msra.mxu0 0.0
    %484 = vmatprep.subr.mxu0 0.0
    %485 = vmatpush1.msra.mxu0 0.0
    %486 = vmatprep.subr.mxu0 0.0
    %487 = vmatpush1.msra.mxu0 0.0
    %488 = vmatprep.subr.mxu0 0.0
    %489 = vmatpush1.msra.mxu0 0.0
    %490 = vmatprep.subr.mxu0 0.0
    %491 = vmatpush1.msra.mxu0 0.0
    %492 = vmatprep.subr.mxu0 0.0
    %493 = vmatpush1.msra.mxu0 0.0
    %494 = vmatprep.subr.mxu0 0.0
    %495 = vmatpush1.msra.mxu0 0.0
    %496 = vmatprep.subr.mxu0 0.0
    %497 = vmatpush1.msra.mxu0 0.0
    %498 = vmatprep.subr.mxu0 0.0
    %499 = vmatpush1.msra.mxu0 0.0
    %500 = vmatprep.subr.mxu0 0.0
    %501 = vmatpush1.msra.mxu0 0.0
    %502 = vmatprep.subr.mxu0 0.0
    %503 = vmatpush1.msra.mxu0 0.0
    %504 = vmatprep.subr.mxu0 0.0
    %505 = vmatpush1.msra.mxu0 0.0
    %506 = vmatprep.subr.mxu0 0.0
    %507 = vmatpush1.msra.mxu0 0.0
    %508 = vmatprep.subr.mxu0 0.0
    %509 = vmatpush1.msra.mxu0 0.0
    %510 = vmatprep.subr.mxu0 0.0
    %511 = vmatpush1.msra.mxu0 0.0
    %512 = vmatprep.subr.mxu0 0.0
    %513 = vmatpush1.msra.mxu0 %v195
    %514 = vmatprep.subr.mxu0 0.0
    %515 = vmatpush2.msra.mxu0 0.0
    %516 = vmatprep.subr.mxu0 0.0
    %517 = vmatpush2.msra.mxu0 0.0
    %518 = vmatprep.subr.mxu0 0.0
    %519 = vmatpush2.msra.mxu0 0.0
    %520 = vmatprep.subr.mxu0 0.0
    %521 = vmatpush2.msra.mxu0 0.0
    %522 = vmatprep.subr.mxu0 0.0
    %523 = vmatpush2.msra.mxu0 0.0
    %524 = vmatprep.subr.mxu0 0.0
    %525 = vmatpush2.msra.mxu0 0.0
    %526 = vmatprep.subr.mxu0 0.0
    %527 = vmatpush2.msra.mxu0 0.0
    %528 = vmatprep.subr.mxu0 0.0
    %529 = vmatpush2.msra.mxu0 0.0
    %530 = vmatprep.subr.mxu0 0.0
    %531 = vmatpush2.msra.mxu0 0.0
    %532 = vmatprep.subr.mxu0 0.0
    %533 = vmatpush2.msra.mxu0 0.0
    %534 = vmatprep.subr.mxu0 0.0
    %535 = vmatpush2.msra.mxu0 0.0
    %536 = vmatprep.subr.mxu0 0.0
    %537 = vmatpush2.msra.mxu0 0.0
    %538 = vmatprep.subr.mxu0 0.0
    %539 = vmatpush2.msra.mxu0 0.0
    %540 = vmatprep.subr.mxu0 0.0
    %541 = vmatpush2.msra.mxu0 0.0
    %542 = vmatprep.subr.mxu0 0.0
    %543 = vmatpush2.msra.mxu0 0.0
    %544 = vmatprep.subr.mxu0 0.0
    %545 = vmatpush2.msra.mxu0 0.0
    %546 = vmatprep.mubr.f32.mxu0 0.0
    %547 = vmatmul.mubr.f32.gmra.mxu0 %v480
    %v548 = vpop.f32.mrf.mxu0
    %v549 = vadd.f32 0.0, %v548
    %v550 = vpop.f32.mrf.mxu0
    %551 = vdwg.mxu0
    %v552 = vld [vmem:[%s6] sm:$0xff]
    %v553 = vld [vmem:[%s6 + $0x8] sm:$0xff]
    %v554 = vld [vmem:[%s6 + $0x10] sm:$0xff]
    %v555 = vld [vmem:[%s6 + $0x18] sm:$0xff]
    %v556 = vld [vmem:[%s7] sm:$0x1]
    %v558 = vlaneseq
    %v559 = vshrl.u32 %v558, 7
    %v560 = vsub.s32 0, %v559
    %v561 = vrot.slane %v556, %v560
    %563 = vrot.lane.b32.xlu0 %v193, 96
    %v564 = vpop.permute.xlu0 %563
    %v565 = vsel %vm225, %v564, 0
    %567 = vmatprep.subr.mxu0 0.0
    %568 = vmatpush1.msra.mxu0 0.0
    %569 = vmatprep.subr.mxu0 0.0
    %570 = vmatpush1.msra.mxu0 0.0
    %571 = vmatprep.subr.mxu0 0.0
    %572 = vmatpush1.msra.mxu0 0.0
    %573 = vmatprep.subr.mxu0 0.0
    %574 = vmatpush1.msra.mxu0 0.0
    %575 = vmatprep.subr.mxu0 0.0
    %576 = vmatpush1.msra.mxu0 0.0
    %577 = vmatprep.subr.mxu0 0.0
    %578 = vmatpush1.msra.mxu0 0.0
    %579 = vmatprep.subr.mxu0 0.0
    %580 = vmatpush1.msra.mxu0 0.0
    %581 = vmatprep.subr.mxu0 0.0
    %582 = vmatpush1.msra.mxu0 0.0
    %583 = vmatprep.subr.mxu0 0.0
    %584 = vmatpush1.msra.mxu0 0.0
    %585 = vmatprep.subr.mxu0 0.0
    %586 = vmatpush1.msra.mxu0 0.0
    %587 = vmatprep.subr.mxu0 0.0
    %588 = vmatpush1.msra.mxu0 0.0
    %589 = vmatprep.subr.mxu0 0.0
    %590 = vmatpush1.msra.mxu0 0.0
    %591 = vmatprep.subr.mxu0 0.0
    %592 = vmatpush1.msra.mxu0 %v555
    %593 = vmatprep.subr.mxu0 0.0
    %594 = vmatpush1.msra.mxu0 %v554
    %595 = vmatprep.subr.mxu0 0.0
    %596 = vmatpush1.msra.mxu0 %v553
    %597 = vmatprep.subr.mxu0 0.0
    %598 = vmatpush1.msra.mxu0 %v552
    %599 = vmatprep.subr.mxu0 0.0
    %600 = vmatpush2.msra.mxu0 0.0
    %601 = vmatprep.subr.mxu0 0.0
    %602 = vmatpush2.msra.mxu0 0.0
    %603 = vmatprep.subr.mxu0 0.0
    %604 = vmatpush2.msra.mxu0 0.0
    %605 = vmatprep.subr.mxu0 0.0
    %606 = vmatpush2.msra.mxu0 0.0
    %607 = vmatprep.subr.mxu0 0.0
    %608 = vmatpush2.msra.mxu0 0.0
    %609 = vmatprep.subr.mxu0 0.0
    %610 = vmatpush2.msra.mxu0 0.0
    %611 = vmatprep.subr.mxu0 0.0
    %612 = vmatpush2.msra.mxu0 0.0
    %613 = vmatprep.subr.mxu0 0.0
    %614 = vmatpush2.msra.mxu0 0.0
    %615 = vmatprep.subr.mxu0 0.0
    %616 = vmatpush2.msra.mxu0 0.0
    %617 = vmatprep.subr.mxu0 0.0
    %618 = vmatpush2.msra.mxu0 0.0
    %619 = vmatprep.subr.mxu0 0.0
    %620 = vmatpush2.msra.mxu0 0.0
    %621 = vmatprep.subr.mxu0 0.0
    %622 = vmatpush2.msra.mxu0 0.0
    %623 = vmatprep.subr.mxu0 0.0
    %624 = vmatpush2.msra.mxu0 0.0
    %625 = vmatprep.subr.mxu0 0.0
    %626 = vmatpush2.msra.mxu0 0.0
    %627 = vmatprep.subr.mxu0 0.0
    %628 = vmatpush2.msra.mxu0 0.0
    %629 = vmatprep.subr.mxu0 0.0
    %630 = vmatpush2.msra.mxu0 0.0
    %631 = vmatprep.mubr.f32.mxu0 0.0
    %632 = vmatmul.mubr.f32.gmra.mxu0 %v565
    %v633 = vpop.f32.mrf.mxu0
    %v634 = vadd.f32 %v561, %v633
    %v635 = vpop.f32.mrf.mxu0
    %636 = vdwg.mxu0
    %vm637 = vcmask 58368
    %638 = vst.msk [vmem:[#allocation8] sm:$0x3] %vm637, %v634
    %v641 = vrot.slane %v549, 7
    %vm642 = vcmask 1041409
    %v643 = vsel %vm642, %v641, %v476
    %vm645 = vcmask 254976
    %646 = vst.msk [vmem:[#allocation9] sm:$0x3] %vm645, %v643
    %648 = vst.msk [vmem:[#allocation11] sm:$0x3] %vm645, %v564
    %649 = vst.msk [vmem:[#allocation3] sm:$0x3] %vm645, %v564
    %650 = vst.msk [vmem:[#allocation4] sm:$0x3] %vm645, %v643
    // Predicated region
    $region42: #{tpu_custom_call.1} parent=1 // pred_check
      _
    $region43: #{tpu_custom_call.1} parent=1 // pred_check_branch
      %652 = sbr.rel (0) target = $region45
    $region44: #{tpu_custom_call.1} parent=1 // pred_region
      %s654 = ssub.s32 32, 32
      %655 = vsyncadd [#allocation7], %s654
      %s657 = sshll.u32 [#allocation8], 4
      %s658 = int_to_ptr.vmem [resolvable:$true] %s657
      %660 = dma.vmem_to_hbm [thread:$0]  %s658, 32, %s8, [#allocation7]
    $region45: #{tpu_custom_call.1} parent=1 // pred_fallthru
      _
    // Predicated region
    $region46: #{tpu_custom_call.1} parent=1 // pred_check
      _
    $region47: #{tpu_custom_call.1} parent=1 // pred_check_branch
      %662 = sbr.rel (0) target = $region49
    $region48: #{tpu_custom_call.1} parent=1 // pred_region
      %s664 = ssub.s32 32, 32
      %665 = vsyncadd [#allocation10], %s664
      %s667 = sshll.u32 [#allocation9], 4
      %s668 = int_to_ptr.vmem [resolvable:$true] %s667
      %670 = dma.vmem_to_hbm [thread:$0]  %s668, 32, %s9, [#allocation10]
    $region49: #{tpu_custom_call.1} parent=1 // pred_fallthru
      _
    // Predicated region
    $region50: #{tpu_custom_call.1} parent=1 // pred_check
      _
    $region51: #{tpu_custom_call.1} parent=1 // pred_check_branch
      %672 = sbr.rel (0) target = $region53
    $region52: #{tpu_custom_call.1} parent=1 // pred_region
      %s674 = ssub.s32 32, 32
      %675 = vsyncadd [#allocation10], %s674
      %s677 = sshll.u32 [#allocation11], 4
      %s678 = int_to_ptr.vmem [resolvable:$true] %s677
      %680 = dma.vmem_to_hbm [thread:$0]  %s678, 32, %s10, [#allocation10]
    $region53: #{tpu_custom_call.1} parent=1 // pred_fallthru
      _
    // Predicated region
    $region54: #{tpu_custom_call.1} parent=1 // pred_check
      _
    $region55: #{tpu_custom_call.1} parent=1 // pred_check_branch
      %682 = sbr.rel (0) target = $region57
    $region56: #{tpu_custom_call.1} parent=1 // pred_region
      %683 = dma.done [#allocation7], 32
    $region57: #{tpu_custom_call.1} parent=1 // pred_fallthru
      _
    // Predicated region
    $region58: #{tpu_custom_call.1} parent=1 // pred_check
      _
    $region59: #{tpu_custom_call.1} parent=1 // pred_check_branch
      %685 = sbr.rel (0) target = $region61
    $region60: #{tpu_custom_call.1} parent=1 // pred_region
      %686 = dma.done [#allocation10], 32
    $region61: #{tpu_custom_call.1} parent=1 // pred_fallthru
      _
    // Predicated region
    $region62: #{tpu_custom_call.1} parent=1 // pred_check
      _
    $region63: #{tpu_custom_call.1} parent=1 // pred_check_branch
      %688 = sbr.rel (0) target = $region65
    $region64: #{tpu_custom_call.1} parent=1 // pred_region
      %689 = dma.done [#allocation10], 32
    $region65: #{tpu_custom_call.1} parent=1 // pred_fallthru
      _
    %690 = vsyncpa [#allocation6], 1
    %691 = vsyncpa [#allocation7], 1
    %692 = vsyncpa [#allocation10], 1

</llo_original>
